<compile_context>
chip_gen: v5e
topology: v5e:2x2
jax: 0.10.0
libtpu: 0.0.40
codegen_flags: <defaults>
</compile_context>

<pallas_src>
import functools

import numpy as np

import jax
import jax.numpy as jnp
from jax.experimental import pallas as pl
from jax.experimental.pallas import tpu as pltpu


_RESEED_EVERY = 4  # re-seed the sin/cos recurrences every this many bands


def _make_freq_bands(max_freq_log2, n_freqs, log_sampling=True):
    """Replicates the module's freq_bands construction (static python floats)."""
    if log_sampling:
        bands = 2.0 ** np.linspace(0.0, max_freq_log2, n_freqs, dtype=np.float32)
    else:
        bands = np.linspace(2.0 ** 0.0, 2.0 ** max_freq_log2, n_freqs,
                            dtype=np.float32)
    return [float(b) for b in bands]


def _round_up(a, b):
    return (a + b - 1) // b * b


def _cdiv(a, b):
    return (a + b - 1) // b


def _vmem_capacity_bytes():
    try:
        info = pltpu.get_tpu_info()
        return int(getattr(info, "vmem_capacity_bytes", 128 << 20))
    except Exception:
        return 128 << 20


def _pick_mode(bands, allow_recurrence):
    """Choose how sin/cos are evaluated across the frequency bands."""
    if not allow_recurrence or len(bands) < 2:
        return "direct"
    if all(bands[i + 1] == 2.0 * bands[i] for i in range(len(bands) - 1)):
        return "pow2"        # exact doublings -> double-angle recurrence
    if len(bands) >= 3:
        d0 = bands[1] - bands[0]
        if d0 != 0.0 and all(
                abs((bands[i + 1] - bands[i]) - d0) <= 1e-6 * abs(d0)
                for i in range(len(bands) - 1)):
            return "linear"  # arithmetic progression -> angle-addition recurrence
    return "direct"


def _band_chunks(x, freq_bands, mode):
    """x: (D, L) f32. Returns [sin(f0 x), cos(f0 x), sin(f1 x), cos(f1 x), ...]."""
    chunks = []
    if mode == "pow2":
        s = c = None
        for i, f in enumerate(freq_bands):
            if i % _RESEED_EVERY == 0:          # periodic direct re-seed bounds drift
                xf = x * f
                s, c = jnp.sin(xf), jnp.cos(xf)
            else:                               # double angle: 3 mul/adds per band
                s, c = 2.0 * s * c, 1.0 - 2.0 * s * s
            chunks += [s, c]
    elif mode == "linear":
        delta = freq_bands[1] - freq_bands[0]
        xd = x * delta
        sd, cd = jnp.sin(xd), jnp.cos(xd)
        s = c = None
        for i, f in enumerate(freq_bands):
            if i % _RESEED_EVERY == 0:
                xf = x * f
                s, c = jnp.sin(xf), jnp.cos(xf)
            else:                               # angle addition: 4 mul/adds per band
                s, c = s * cd + c * sd, c * cd - s * sd
            chunks += [s, c]
    else:
        for f in freq_bands:                    # general / exact path
            xf = x * f
            chunks += [jnp.sin(xf), jnp.cos(xf)]
    return chunks


def _freq_kernel_natural(x_ref, o_ref, asm_ref, *, freq_bands, include_input,
                         input_dim, mode):
    """Writes the output directly in the module's (points, features) layout.

    x_ref  : (D, tn)        transposed input tile (points on the lane axis).
    o_ref  : (tn, out_dim)  output tile, natural layout.
    asm_ref: (rows_pad, 128) f32 scratch; one 128-point sub-block is assembled
             lane-dense here, then transposed on-chip (idle XLU) and stored as
             a single coalesced (128, out_dim) slab.
    """
    d = input_dim
    tn = o_ref.shape[0]
    out_dim = o_ref.shape[1]
    odt = o_ref.dtype

    @pl.loop(0, tn // 128)
    def _(j):
        col = pl.multiple_of(j * 128, 128)
        # f32 compute regardless of input dtype (bf16 range reduction is poor,
        # and v5e has no bf16 VPU path anyway).
        x = x_ref[:, pl.ds(col, 128)].astype(jnp.float32)        # (D, 128)
        row = 0
        if include_input:
            asm_ref[0:d, :] = x
            row = d
        for chunk in _band_chunks(x, freq_bands, mode):
            asm_ref[row:row + d, :] = chunk
            row += d
        # Rows [out_dim, rows_pad) of asm_ref are never written and are sliced
        # away below, so they never reach HBM.
        tile_t = jnp.transpose(asm_ref[...])                     # (128, rows_pad)
        o_ref[pl.ds(col, 128), :] = tile_t[:, :out_dim].astype(odt)


def _freq_kernel_wide(x_ref, o_ref, *, freq_bands, include_input, input_dim,
                      mode):
    """Writes the output in transposed (features, points) layout.

    Used for transposed_output=True (preferred for W @ X consumers) and as the
    known-good fallback path.
    """
    d = input_dim
    odt = o_ref.dtype
    x = x_ref[...].astype(jnp.float32)                           # (D, tn)
    row = 0
    if include_input:
        o_ref[0:d, :] = x.astype(odt)
        row = d
    for chunk in _band_chunks(x, freq_bands, mode):
        o_ref[row:row + d, :] = chunk.astype(odt)
        row += d


def freq_encoder(x, *, max_freq_log2, n_freqs, log_sampling=True,
                 include_input=True, col_tile=32768, allow_recurrence=True,
                 out_dtype=None, transposed_output=False):
    """Pallas-backed FreqEncoder.forward.

    x: (N, input_dim) float array (any N).
    Returns (N, output_dim) with
      output_dim = (input_dim if include_input else 0) + input_dim * n_freqs * 2.
    transposed_output=True returns the (output_dim, N) layout instead (saves an
    HBM pass when the consumer is a W @ X matmul).
    Note: setting out_dtype != x.dtype also casts the include_input passthrough
    rows (slight deviation from the PyTorch concat); default keeps x.dtype.
    """
    n, d = x.shape
    freq_bands = _make_freq_bands(max_freq_log2, n_freqs, log_sampling)
    n_chunks = (1 if include_input else 0) + 2 * len(freq_bands)
    out_dim = n_chunks * d
    out_dtype = x.dtype if out_dtype is None else out_dtype
    mode = _pick_mode(freq_bands, allow_recurrence)

    # Generation-aware tile / VMEM budget.  Dominant buffer is the lane-padded
    # (tn, out_dim) output block (~tn * 512 B each, double buffered); never
    # request the whole physical VMEM (v7x only has 64 MiB).
    vmem_cap = _vmem_capacity_bytes()
    if vmem_cap <= (64 << 20):               # v7x-class part
        max_tile, vmem_limit = 16384, 40 << 20
    else:                                     # v5e / v6e (128 MiB VMEM)
        max_tile, vmem_limit = 32768, 80 << 20
    col_tile = min(col_tile, max_tile)

    # Point tile: bounded padding waste, and >=2 grid steps whenever there is
    # enough data so both v7x TensorCores get work.
    if n <= 128:
        tn = 128
    else:
        steps = max(2, _cdiv(n, col_tile))
        tn = min(_round_up(_cdiv(n, steps), 128), col_tile)
    grid = _cdiv(n, tn)
    n_pad = grid * tn

    # Input relayout: pad along the point axis *before* transposing so XLA
    # fuses pad+transpose into one (small) pass over the input.
    xp = x if n_pad == n else jnp.pad(x, ((0, n_pad - n), (0, 0)))
    xt = jnp.transpose(xp)                                       # (D, n_pad)

    common = dict(freq_bands=tuple(freq_bands), include_input=include_input,
                  input_dim=d, mode=mode)
    cparams = pltpu.CompilerParams(dimension_semantics=("parallel",),
                                   vmem_limit_bytes=vmem_limit)

    def run_wide(out_cols):
        return pl.pallas_call(
            functools.partial(_freq_kernel_wide, **common),
            out_shape=jax.ShapeDtypeStruct((out_dim, out_cols), out_dtype),
            grid_spec=pltpu.PrefetchScalarGridSpec(
                num_scalar_prefetch=0, grid=(grid,),
                in_specs=[pl.BlockSpec((d, tn), lambda i: (0, i))],
                out_specs=pl.BlockSpec((out_dim, tn), lambda i: (0, i))),
            compiler_params=cparams,
        )(xt)

    if transposed_output:
        try:
            return run_wide(n)                     # partial final block if ragged
        except Exception:
            return run_wide(n_pad)[:, :n]

    def run_natural():
        rows_pad = _round_up(out_dim, 128)         # keep the on-chip transpose
        return pl.pallas_call(                     # on well-aligned shapes
            functools.partial(_freq_kernel_natural, **common),
            out_shape=jax.ShapeDtypeStruct((n, out_dim), out_dtype),
            grid_spec=pltpu.PrefetchScalarGridSpec(
                num_scalar_prefetch=0, grid=(grid,),
                in_specs=[pl.BlockSpec((d, tn), lambda i: (0, i))],
                out_specs=pl.BlockSpec((tn, out_dim), lambda i: (i, 0)),
                scratch_shapes=[pltpu.VMEM((rows_pad, 128), jnp.float32)]),
            compiler_params=cparams,
        )(xt)

    try:
        return run_natural()
    except Exception:
        # Known-good fallback (previous revision): wide-layout kernel + XLA
        # transpose.  Costs one extra HBM pass over the output; only taken if
        # the transposed-store kernel fails to lower on this toolchain.
        return jnp.transpose(run_wide(n_pad)[:, :n])


def freq_encoder_ref(x, *, max_freq_log2, n_freqs, log_sampling=True,
                     include_input=True):
    """Pure-JAX reference mirroring the PyTorch forward."""
    freq_bands = _make_freq_bands(max_freq_log2, n_freqs, log_sampling)
    out = []
    if include_input:
        out.append(x)
    for freq in freq_bands:
        out.append(jnp.sin(x * freq))
        out.append(jnp.cos(x * freq))
    return jnp.concatenate(out, axis=-1)


if __name__ == "__main__":
    key = jax.random.PRNGKey(0)
    D = 4
    max_freq_log2 = 3.0
    n_freqs = 4
    expected_dim = D + D * n_freqs * 2

    # Case 1: power-of-two bands -> double-angle recurrence, exact tiling.
    N1 = 256
    x1 = jax.random.normal(key, (N1, D), dtype=jnp.float32)
    out1 = jax.block_until_ready(
        freq_encoder(x1, max_freq_log2=max_freq_log2, n_freqs=n_freqs,
                     log_sampling=True, include_input=True))
    ref1 = freq_encoder_ref(x1, max_freq_log2=max_freq_log2, n_freqs=n_freqs,
                            log_sampling=True, include_input=True)
    assert out1.shape == (N1, expected_dim), out1.shape
    assert jnp.allclose(out1, ref1, atol=1e-4, rtol=1e-4), \
        float(jnp.max(jnp.abs(out1 - ref1)))

    # Case 2: N not a multiple of the tile (partial final block) + direct path.
    N2 = 300
    x2 = jax.random.normal(jax.random.PRNGKey(1), (N2, D), dtype=jnp.float32)
    out2 = jax.block_until_ready(
        freq_encoder(x2, max_freq_log2=max_freq_log2, n_freqs=n_freqs,
                     log_sampling=True, include_input=True,
                     allow_recurrence=False))
    ref2 = freq_encoder_ref(x2, max_freq_log2=max_freq_log2, n_freqs=n_freqs,
                            log_sampling=True, include_input=True)
    assert out2.shape == (N2, expected_dim), out2.shape
    assert jnp.allclose(out2, ref2, atol=1e-5, rtol=1e-5), \
        float(jnp.max(jnp.abs(out2 - ref2)))

    # Case 3: linearly spaced bands -> angle-addition recurrence,
    # include_input=False.
    out3 = jax.block_until_ready(
        freq_encoder(x1, max_freq_log2=max_freq_log2, n_freqs=n_freqs,
                     log_sampling=False, include_input=False))
    ref3 = freq_encoder_ref(x1, max_freq_log2=max_freq_log2, n_freqs=n_freqs,
                            log_sampling=False, include_input=False)
    assert out3.shape == (N1, D * n_freqs * 2), out3.shape
    assert jnp.allclose(out3, ref3, atol=1e-4, rtol=1e-4), \
        float(jnp.max(jnp.abs(out3 - ref3)))

    # Case 4: transposed (out_dim, N) output layout for matmul consumers.
    out4 = jax.block_until_ready(
        freq_encoder(x1, max_freq_log2=max_freq_log2, n_freqs=n_freqs,
                     log_sampling=True, include_input=True,
                     transposed_output=True))
    assert out4.shape == (expected_dim, N1), out4.shape
    assert jnp.allclose(out4, jnp.transpose(ref1), atol=1e-4, rtol=1e-4)

    print("KERNEL_OK")
</pallas_src>

<mosaic_0001>
module attributes {stable_mosaic.version = 11 : i64} {
  func.func @_freq_kernel_natural(%arg0: i32, %arg1: memref<4x128xf32, #tpu.memory_space<vmem>>, %arg2: memref<128x36xf32, #tpu.memory_space<vmem>>, %arg3: memref<128x128xf32, #tpu.memory_space<vmem>>) attributes {dimension_semantics = [#tpu.dimension_semantics<parallel>], iteration_bounds = array<i64: 2>, scalar_prefetch = 0 : i64, scratch_operands = 1 : i64, tpu.core_type = #tpu.core_type<tc>, window_params = [{transform_indices = @transform_0, window_bounds = array<i64: 4, 128>}, {transform_indices = @transform_1, window_bounds = array<i64: 128, 36>}]} {
    %c0_i32 = arith.constant 0 : i32
    %c1_i32 = arith.constant 1 : i32
    %0 = arith.muli %c0_i32, %c1_i32 : i32
    %c0_i32_0 = arith.constant 0 : i32
    %1 = arith.addi %c0_i32_0, %0 : i32
    %c128_i32 = arith.constant 128 : i32
    %2 = arith.muli %1, %c128_i32 : i32
    %3 = tpu.assume_multiple %2, 128 : i32
    %c0 = arith.constant 0 : index
    %4 = arith.index_cast %3 : i32 to index
    %5 = vector.load %arg1[%c0, %4] : memref<4x128xf32, #tpu.memory_space<vmem>>, vector<4x128xf32>
    %c0_1 = arith.constant 0 : index
    %c0_2 = arith.constant 0 : index
    %6 = vector.load %arg3[%c0_1, %c0_2] : memref<128x128xf32, #tpu.memory_space<vmem>>, vector<4x128xf32>
    tpu.vector_store %arg3[%c0_1, %c0_2], %5 {strides = array<i32>} : memref<128x128xf32, #tpu.memory_space<vmem>>, vector<4x128xf32>,
    %cst = arith.constant 1.000000e+00 : f32
    %7 = vector.broadcast %cst : f32 to vector<4x128xf32>
    %8 = arith.mulf %5, %7 : vector<4x128xf32>
    %9 = math.sin %8 : vector<4x128xf32>
    %10 = math.cos %8 : vector<4x128xf32>
    %cst_3 = arith.constant 2.000000e+00 : f32
    %11 = vector.broadcast %cst_3 : f32 to vector<4x128xf32>
    %12 = arith.mulf %11, %9 : vector<4x128xf32>
    %13 = arith.mulf %12, %10 : vector<4x128xf32>
    %cst_4 = arith.constant 2.000000e+00 : f32
    %14 = vector.broadcast %cst_4 : f32 to vector<4x128xf32>
    %15 = arith.mulf %14, %9 : vector<4x128xf32>
    %16 = arith.mulf %15, %9 : vector<4x128xf32>
    %cst_5 = arith.constant 1.000000e+00 : f32
    %17 = vector.broadcast %cst_5 : f32 to vector<4x128xf32>
    %18 = arith.subf %17, %16 : vector<4x128xf32>
    %cst_6 = arith.constant 2.000000e+00 : f32
    %19 = vector.broadcast %cst_6 : f32 to vector<4x128xf32>
    %20 = arith.mulf %19, %13 : vector<4x128xf32>
    %21 = arith.mulf %20, %18 : vector<4x128xf32>
    %cst_7 = arith.constant 2.000000e+00 : f32
    %22 = vector.broadcast %cst_7 : f32 to vector<4x128xf32>
    %23 = arith.mulf %22, %13 : vector<4x128xf32>
    %24 = arith.mulf %23, %13 : vector<4x128xf32>
    %cst_8 = arith.constant 1.000000e+00 : f32
    %25 = vector.broadcast %cst_8 : f32 to vector<4x128xf32>
    %26 = arith.subf %25, %24 : vector<4x128xf32>
    %cst_9 = arith.constant 2.000000e+00 : f32
    %27 = vector.broadcast %cst_9 : f32 to vector<4x128xf32>
    %28 = arith.mulf %27, %21 : vector<4x128xf32>
    %29 = arith.mulf %28, %26 : vector<4x128xf32>
    %cst_10 = arith.constant 2.000000e+00 : f32
    %30 = vector.broadcast %cst_10 : f32 to vector<4x128xf32>
    %31 = arith.mulf %30, %21 : vector<4x128xf32>
    %32 = arith.mulf %31, %21 : vector<4x128xf32>
    %cst_11 = arith.constant 1.000000e+00 : f32
    %33 = vector.broadcast %cst_11 : f32 to vector<4x128xf32>
    %34 = arith.subf %33, %32 : vector<4x128xf32>
    %c4 = arith.constant 4 : index
    %c0_12 = arith.constant 0 : index
    %35 = vector.load %arg3[%c4, %c0_12] : memref<128x128xf32, #tpu.memory_space<vmem>>, vector<4x128xf32>
    tpu.vector_store %arg3[%c4, %c0_12], %9 {strides = array<i32>} : memref<128x128xf32, #tpu.memory_space<vmem>>, vector<4x128xf32>,
    %c8 = arith.constant 8 : index
    %c0_13 = arith.constant 0 : index
    %36 = vector.load %arg3[%c8, %c0_13] : memref<128x128xf32, #tpu.memory_space<vmem>>, vector<4x128xf32>
    tpu.vector_store %arg3[%c8, %c0_13], %10 {strides = array<i32>} : memref<128x128xf32, #tpu.memory_space<vmem>>, vector<4x128xf32>,
    %c12 = arith.constant 12 : index
    %c0_14 = arith.constant 0 : index
    %37 = vector.load %arg3[%c12, %c0_14] : memref<128x128xf32, #tpu.memory_space<vmem>>, vector<4x128xf32>
    tpu.vector_store %arg3[%c12, %c0_14], %13 {strides = array<i32>} : memref<128x128xf32, #tpu.memory_space<vmem>>, vector<4x128xf32>,
    %c16 = arith.constant 16 : index
    %c0_15 = arith.constant 0 : index
    %38 = vector.load %arg3[%c16, %c0_15] : memref<128x128xf32, #tpu.memory_space<vmem>>, vector<4x128xf32>
    tpu.vector_store %arg3[%c16, %c0_15], %18 {strides = array<i32>} : memref<128x128xf32, #tpu.memory_space<vmem>>, vector<4x128xf32>,
    %c20 = arith.constant 20 : index
    %c0_16 = arith.constant 0 : index
    %39 = vector.load %arg3[%c20, %c0_16] : memref<128x128xf32, #tpu.memory_space<vmem>>, vector<4x128xf32>
    tpu.vector_store %arg3[%c20, %c0_16], %21 {strides = array<i32>} : memref<128x128xf32, #tpu.memory_space<vmem>>, vector<4x128xf32>,
    %c24 = arith.constant 24 : index
    %c0_17 = arith.constant 0 : index
    %40 = vector.load %arg3[%c24, %c0_17] : memref<128x128xf32, #tpu.memory_space<vmem>>, vector<4x128xf32>
    tpu.vector_store %arg3[%c24, %c0_17], %26 {strides = array<i32>} : memref<128x128xf32, #tpu.memory_space<vmem>>, vector<4x128xf32>,
    %c28 = arith.constant 28 : index
    %c0_18 = arith.constant 0 : index
    %41 = vector.load %arg3[%c28, %c0_18] : memref<128x128xf32, #tpu.memory_space<vmem>>, vector<4x128xf32>
    tpu.vector_store %arg3[%c28, %c0_18], %29 {strides = array<i32>} : memref<128x128xf32, #tpu.memory_space<vmem>>, vector<4x128xf32>,
    %c32 = arith.constant 32 : index
    %c0_19 = arith.constant 0 : index
    %42 = vector.load %arg3[%c32, %c0_19] : memref<128x128xf32, #tpu.memory_space<vmem>>, vector<4x128xf32>
    tpu.vector_store %arg3[%c32, %c0_19], %34 {strides = array<i32>} : memref<128x128xf32, #tpu.memory_space<vmem>>, vector<4x128xf32>,
    %c0_20 = arith.constant 0 : index
    %c0_21 = arith.constant 0 : index
    %43 = vector.load %arg3[%c0_20, %c0_21] : memref<128x128xf32, #tpu.memory_space<vmem>>, vector<128x128xf32>
    %44 = tpu.transpose %43, [1, 0] : vector<128x128xf32> -> vector<128x128xf32>
    %45 = vector.extract_strided_slice %44 {offsets = [0, 0], sizes = [128, 36], strides = [1, 1]} : vector<128x128xf32> to vector<128x36xf32>
    %46 = arith.index_cast %3 : i32 to index
    %c0_22 = arith.constant 0 : index
    %47 = vector.load %arg2[%46, %c0_22] : memref<128x36xf32, #tpu.memory_space<vmem>>, vector<128x36xf32>
    tpu.vector_store %arg2[%46, %c0_22], %45 {strides = array<i32>} : memref<128x36xf32, #tpu.memory_space<vmem>>, vector<128x36xf32>,
    %c1_i32_23 = arith.constant 1 : i32
    return
  }
  func.func @transform_0(%arg0: i32) -> (i32, i32) {
    %c0_i32 = arith.constant 0 : i32
    %c0_i32_0 = arith.constant 0 : i32
    return %c0_i32, %arg0 : i32, i32
  }
  func.func @transform_1(%arg0: i32) -> (i32, i32) {
    %c0_i32 = arith.constant 0 : i32
    %c0_i32_0 = arith.constant 0 : i32
    return %arg0, %c0_i32 : i32, i32
  }
}

module attributes {stable_mosaic.version = 11 : i64} {
  func.func @_freq_kernel_wide(%arg0: i32, %arg1: memref<4x128xf32, #tpu.memory_space<vmem>>, %arg2: memref<36x128xf32, #tpu.memory_space<vmem>>) attributes {dimension_semantics = [#tpu.dimension_semantics<parallel>], iteration_bounds = array<i64: 2>, scalar_prefetch = 0 : i64, scratch_operands = 0 : i64, tpu.core_type = #tpu.core_type<tc>, window_params = [{transform_indices = @transform_0, window_bounds = array<i64: 4, 128>}, {transform_indices = @transform_1, window_bounds = array<i64: 36, 128>}]} {
    %c0 = arith.constant 0 : index
    %c0_0 = arith.constant 0 : index
    %0 = vector.load %arg1[%c0, %c0_0] : memref<4x128xf32, #tpu.memory_space<vmem>>, vector<4x128xf32>
    %c0_1 = arith.constant 0 : index
    %c0_2 = arith.constant 0 : index
    %1 = vector.load %arg2[%c0_1, %c0_2] : memref<36x128xf32, #tpu.memory_space<vmem>>, vector<4x128xf32>
    tpu.vector_store %arg2[%c0_1, %c0_2], %0 {strides = array<i32>} : memref<36x128xf32, #tpu.memory_space<vmem>>, vector<4x128xf32>,
    %cst = arith.constant 1.000000e+00 : f32
    %2 = vector.broadcast %cst : f32 to vector<4x128xf32>
    %3 = arith.mulf %0, %2 : vector<4x128xf32>
    %4 = math.sin %3 : vector<4x128xf32>
    %5 = math.cos %3 : vector<4x128xf32>
    %cst_3 = arith.constant 2.000000e+00 : f32
    %6 = vector.broadcast %cst_3 : f32 to vector<4x128xf32>
    %7 = arith.mulf %6, %4 : vector<4x128xf32>
    %8 = arith.mulf %7, %5 : vector<4x128xf32>
    %cst_4 = arith.constant 2.000000e+00 : f32
    %9 = vector.broadcast %cst_4 : f32 to vector<4x128xf32>
    %10 = arith.mulf %9, %4 : vector<4x128xf32>
    %11 = arith.mulf %10, %4 : vector<4x128xf32>
    %cst_5 = arith.constant 1.000000e+00 : f32
    %12 = vector.broadcast %cst_5 : f32 to vector<4x128xf32>
    %13 = arith.subf %12, %11 : vector<4x128xf32>
    %cst_6 = arith.constant 2.000000e+00 : f32
    %14 = vector.broadcast %cst_6 : f32 to vector<4x128xf32>
    %15 = arith.mulf %14, %8 : vector<4x128xf32>
    %16 = arith.mulf %15, %13 : vector<4x128xf32>
    %cst_7 = arith.constant 2.000000e+00 : f32
    %17 = vector.broadcast %cst_7 : f32 to vector<4x128xf32>
    %18 = arith.mulf %17, %8 : vector<4x128xf32>
    %19 = arith.mulf %18, %8 : vector<4x128xf32>
    %cst_8 = arith.constant 1.000000e+00 : f32
    %20 = vector.broadcast %cst_8 : f32 to vector<4x128xf32>
    %21 = arith.subf %20, %19 : vector<4x128xf32>
    %cst_9 = arith.constant 2.000000e+00 : f32
    %22 = vector.broadcast %cst_9 : f32 to vector<4x128xf32>
    %23 = arith.mulf %22, %16 : vector<4x128xf32>
    %24 = arith.mulf %23, %21 : vector<4x128xf32>
    %cst_10 = arith.constant 2.000000e+00 : f32
    %25 = vector.broadcast %cst_10 : f32 to vector<4x128xf32>
    %26 = arith.mulf %25, %16 : vector<4x128xf32>
    %27 = arith.mulf %26, %16 : vector<4x128xf32>
    %cst_11 = arith.constant 1.000000e+00 : f32
    %28 = vector.broadcast %cst_11 : f32 to vector<4x128xf32>
    %29 = arith.subf %28, %27 : vector<4x128xf32>
    %c4 = arith.constant 4 : index
    %c0_12 = arith.constant 0 : index
    %30 = vector.load %arg2[%c4, %c0_12] : memref<36x128xf32, #tpu.memory_space<vmem>>, vector<4x128xf32>
    tpu.vector_store %arg2[%c4, %c0_12], %4 {strides = array<i32>} : memref<36x128xf32, #tpu.memory_space<vmem>>, vector<4x128xf32>,
    %c8 = arith.constant 8 : index
    %c0_13 = arith.constant 0 : index
    %31 = vector.load %arg2[%c8, %c0_13] : memref<36x128xf32, #tpu.memory_space<vmem>>, vector<4x128xf32>
    tpu.vector_store %arg2[%c8, %c0_13], %5 {strides = array<i32>} : memref<36x128xf32, #tpu.memory_space<vmem>>, vector<4x128xf32>,
    %c12 = arith.constant 12 : index
    %c0_14 = arith.constant 0 : index
    %32 = vector.load %arg2[%c12, %c0_14] : memref<36x128xf32, #tpu.memory_space<vmem>>, vector<4x128xf32>
    tpu.vector_store %arg2[%c12, %c0_14], %8 {strides = array<i32>} : memref<36x128xf32, #tpu.memory_space<vmem>>, vector<4x128xf32>,
    %c16 = arith.constant 16 : index
    %c0_15 = arith.constant 0 : index
    %33 = vector.load %arg2[%c16, %c0_15] : memref<36x128xf32, #tpu.memory_space<vmem>>, vector<4x128xf32>
    tpu.vector_store %arg2[%c16, %c0_15], %13 {strides = array<i32>} : memref<36x128xf32, #tpu.memory_space<vmem>>, vector<4x128xf32>,
    %c20 = arith.constant 20 : index
    %c0_16 = arith.constant 0 : index
    %34 = vector.load %arg2[%c20, %c0_16] : memref<36x128xf32, #tpu.memory_space<vmem>>, vector<4x128xf32>
    tpu.vector_store %arg2[%c20, %c0_16], %16 {strides = array<i32>} : memref<36x128xf32, #tpu.memory_space<vmem>>, vector<4x128xf32>,
    %c24 = arith.constant 24 : index
    %c0_17 = arith.constant 0 : index
    %35 = vector.load %arg2[%c24, %c0_17] : memref<36x128xf32, #tpu.memory_space<vmem>>, vector<4x128xf32>
    tpu.vector_store %arg2[%c24, %c0_17], %21 {strides = array<i32>} : memref<36x128xf32, #tpu.memory_space<vmem>>, vector<4x128xf32>,
    %c28 = arith.constant 28 : index
    %c0_18 = arith.constant 0 : index
    %36 = vector.load %arg2[%c28, %c0_18] : memref<36x128xf32, #tpu.memory_space<vmem>>, vector<4x128xf32>
    tpu.vector_store %arg2[%c28, %c0_18], %24 {strides = array<i32>} : memref<36x128xf32, #tpu.memory_space<vmem>>, vector<4x128xf32>,
    %c32 = arith.constant 32 : index
    %c0_19 = arith.constant 0 : index
    %37 = vector.load %arg2[%c32, %c0_19] : memref<36x128xf32, #tpu.memory_space<vmem>>, vector<4x128xf32>
    tpu.vector_store %arg2[%c32, %c0_19], %29 {strides = array<i32>} : memref<36x128xf32, #tpu.memory_space<vmem>>, vector<4x128xf32>,
    return
  }
  func.func @transform_0(%arg0: i32) -> (i32, i32) {
    %c0_i32 = arith.constant 0 : i32
    %c0_i32_0 = arith.constant 0 : i32
    return %c0_i32, %arg0 : i32, i32
  }
  func.func @transform_1(%arg0: i32) -> (i32, i32) {
    %c0_i32 = arith.constant 0 : i32
    %c0_i32_0 = arith.constant 0 : i32
    return %c0_i32, %arg0 : i32, i32
  }
}

</mosaic_0001>

<llo_original>
// kernel: tpu_custom_call.1
$region0: #{tpu_custom_call.1}
  #allocation0 [shape = 'u32[]', space=smem, size = 0x4, offset = 0x4, fixed_abs, tag = 'smem constant byte address 0x4 - core index']
  #allocation1 [shape = 'u32[72,128]{1,0:T(1,128)}', space=vmem, size = 0x9000, scoped, tag = 'internal scratch']
  #allocation2 [shape = 'f32[128,128]{1,0:T(8,128)}', space=vmem, size = 0x10000, scoped, tag = 'scratch operand']
  %s0 = inlined_call_operand.hbm [shape: f32[4,256], index: 0, kind: input, shape index: {}]
  %s1 = inlined_call_operand.vmem [shape: f32[256,36], index: 1, kind: output, shape index: {}]
  %s2 = sld [smem:[#allocation0]]
  $region41: #{tpu_custom_call.1} parent=0
    _
  %s4 = ssub.s32 1, %s2
  %s5 = scalar_select 0, %s4, %s2
  $region1: #{tpu_custom_call.1} parent=0
    #allocation3 [shape = 'u8[4096]{0}', space=vmem, size = 0x1000, scoped, tag = 'input window, operand 0']
    #allocation4 [shape = 's32[2]{0}', space=sflag, size = 0x8, scoped, tag = 'scoped memory for tpu_custom_call.1']
    %6 = vsyncpa [#allocation4], 0
    %s7 = scalar_lea.sflag [#allocation4], 1
    %8 = vsyncpa %s7, 0
    loop: start=0, step=1, limit=4
    $region2: #{tpu_custom_call.1} parent=1 // loop_pre_header
      _
    $region3: #{tpu_custom_call.1} parent=1 // loop_header
      %s10 = sphi 0, %s14
      %p11 = scmp.ge.s32.totalorder %s10, 4
      %s20 = sphi 0, %s22
      %s23 = sphi 0, %s20
      %s24 = sphi 0, %s23
      %s40 = sphi 0, %s24
      %s46 = sphi 0, %s48
      %s49 = sphi 0, %s46
      %s50 = sphi 0, %s49
      %s66 = sphi 0, %s50
    $region4: #{tpu_custom_call.1} parent=1 // loop_header_branch
      %13 = sbr.rel (%p11) target = $region8
    $region5: #{tpu_custom_call.1} parent=1 // loop_body
      %s15 = ssub.s32 %s10, 1
      %s16 = ssub.s32 %s10, 2
      %s17 = sadd.s32 %s10, 1
      %s18 = ssub.s32 %s10, %s17
      %p19 = scmp.eq.s32.totalorder %s18, 0
      %s21 = sadd.s32 %s20, 1
      %s22 = scalar_select %p19, %s20, %s21
      %p25 = pneg %p19
      %p26 = scmp.eq.s32.totalorder %s10, 1
      %p27 = por %p25, %p26
      %p28 = scmp.ne.s32.totalorder %s20, %s23
      %p29 = scmp.eq.s32.totalorder %s10, 0
      %p30 = por %p28, %p29
      %p31 = scmp.ne.s32.totalorder %s20, %s23
      %p32 = scmp.eq.s32.totalorder %s15, 1
      %p33 = por %p31, %p32
      %p34 = scmp.ne.s32.totalorder %s23, %s24
      %p35 = scmp.eq.s32.totalorder %s15, 0
      %p36 = por %p34, %p35
      %p37 = scmp.ne.s32.totalorder %s23, %s24
      %p38 = scmp.eq.s32.totalorder %s16, 1
      %p39 = por %p37, %p38
      %p41 = scmp.ne.s32.totalorder %s24, %s40
      %p42 = scmp.eq.s32.totalorder %s16, 0
      %p43 = por %p41, %p42
      %s44 = ssub.s32 %s10, %s17
      %p45 = scmp.eq.s32.totalorder %s44, 0
      %s47 = sadd.s32 %s46, 1
      %s48 = scalar_select %p45, %s46, %s47
      %p51 = pneg %p45
      %p52 = scmp.eq.s32.totalorder %s10, 1
      %p53 = por %p51, %p52
      %p54 = scmp.ne.s32.totalorder %s46, %s49
      %p55 = scmp.eq.s32.totalorder %s10, 0
      %p56 = por %p54, %p55
      %p57 = scmp.ne.s32.totalorder %s46, %s49
      %p58 = scmp.eq.s32.totalorder %s15, 1
      %p59 = por %p57, %p58
      %p60 = scmp.ne.s32.totalorder %s49, %s50
      %p61 = scmp.eq.s32.totalorder %s15, 0
      %p62 = por %p60, %p61
      %p63 = scmp.ne.s32.totalorder %s49, %s50
      %p64 = scmp.eq.s32.totalorder %s16, 1
      %p65 = por %p63, %p64
      %p67 = scmp.ne.s32.totalorder %s50, %s66
      %p68 = scmp.eq.s32.totalorder %s16, 0
      %p69 = por %p67, %p68
      %p70 = scmp.le.s32.totalorder 1, %s10
      %p71 = scmp.lt.s32.totalorder %s10, 3
      %p72 = pnand %p70, %p71
      %p73 = pneg %p72
      // Predicated region
      $region9: #{tpu_custom_call.1} parent=5 // pred_check
        _
      $region10: #{tpu_custom_call.1} parent=5 // pred_check_branch
        %75 = sbr.rel (%p72) target = $region12
      $region11: #{tpu_custom_call.1} parent=5 // pred_region
        %s76 = ssub.s32 %s10, 1
      $region12: #{tpu_custom_call.1} parent=5 // pred_fallthru
        _
      %p77 = scmp.lt.s32.totalorder %s10, 2
      // Predicated region
      $region13: #{tpu_custom_call.1} parent=5 // pred_check
        %p78 = pneg %p77
      $region14: #{tpu_custom_call.1} parent=5 // pred_check_branch
        %80 = sbr.rel (%p78) target = $region16
      $region15: #{tpu_custom_call.1} parent=5 // pred_region
        // Predicated region
        $region17: #{tpu_custom_call.1} parent=15 // pred_check
          %p81 = pneg %p30
        $region18: #{tpu_custom_call.1} parent=15 // pred_check_branch
          %83 = sbr.rel (%p81) target = $region20
        $region19: #{tpu_custom_call.1} parent=15 // pred_region
          %s84 = sand.u32 %s20, 1
          %s85 = scalar_lea.sflag [#allocation4], %s84
          %s86 = sand.u32 %s20, 1
          %s87 = smul.addr %s86, 4
          %s88 = scalar_lea.vmem [#allocation3], %s87
          %90 = vsyncadd %s85, 0
          %s91 = smul.addr %s10, 4
          %s92 = scalar_lea.hbm %s0, %s91
          %s94 = sshll.u32 %s92, 4
          %s95 = int_to_ptr.hbm [resolvable:$true] %s94
          %s96 = sshll.u32 %s88, 4
          %s97 = int_to_ptr.vmem [resolvable:$true] %s96
          %99 = dma.hbm_to_vmem [thread:$0]  %s95, 64, %s97, %s85
        $region20: #{tpu_custom_call.1} parent=15 // pred_fallthru
          _
      $region16: #{tpu_custom_call.1} parent=5 // pred_fallthru
        _
      %p100 = scmp.le.s32.totalorder 1, %s10
      %p101 = scmp.lt.s32.totalorder %s10, 3
      %p102 = pnand %p100, %p101
      %p103 = pneg %p102
      // Predicated region
      $region21: #{tpu_custom_call.1} parent=5 // pred_check
        _
      $region22: #{tpu_custom_call.1} parent=5 // pred_check_branch
        %105 = sbr.rel (%p102) target = $region24
      $region23: #{tpu_custom_call.1} parent=5 // pred_region
        %s106 = ssub.s32 %s10, 1
        %s107 = sand.u32 %s23, 1
        %s108 = scalar_lea.sflag [#allocation4], %s107
        %s109 = sand.u32 %s23, 1
        %s110 = smul.addr %s109, 4
        %s111 = scalar_lea.vmem [#allocation3], %s110
        // Predicated region
        $region25: #{tpu_custom_call.1} parent=23 // pred_check
          %p112 = pneg %p36
        $region26: #{tpu_custom_call.1} parent=23 // pred_check_branch
          %114 = sbr.rel (%p112) target = $region28
        $region27: #{tpu_custom_call.1} parent=23 // pred_region
          %116 = dma.done %s108, 64
        $region28: #{tpu_custom_call.1} parent=23 // pred_fallthru
          _
        %s117 = sand.u32 %s23, 1
        %s118 = scalar_lea.sflag [#allocation4], %s117
        %s119 = sand.u32 %s23, 1
        %s120 = smul.addr %s119, 4
        %s121 = scalar_lea.vmem [#allocation3], %s120
        %p122 = pneg %p36
        %p123 = pneg %p33
        %p124 = pneg %p62
        %p125 = pneg %p59
        %s126 = smul.u32 16, %s15
        %p127 = scmp.lt.s32.totalorder %s126, 31
        %s128 = scalar_select %p127, %s126, 31
        %s129 = smul.addr %s128, 8
        %s130 = scalar_lea.vmem %s1, %s129
        %s131 = smul.u32 16, %s15
        %p132 = scmp.lt.s32.totalorder %s131, 31
        %s133 = scalar_select %p132, %s131, 31
        %s134 = smul.addr %s133, 8
        %s135 = scalar_lea.vmem %s1, %s134
        %s136 = smul.u32 16, %s15
        %v137 = vld [vmem:[%s111] sm:$0xf]
        %138 = vst [vmem:[#allocation2] sm:$0xf] %v137
        %v139 = vand.u32 2147483647, %v137
        %vm140 = vcmp.le.f32.partialorder %v139, 0.7853982
        %vm141 = vcmp.lt.s32.totalorder %v137, 0
        %v142 = vand.u32 %v137, 2139095040
        %v143 = vshrl.u32 %v142, 23
        %v144 = vsub.s32 %v143, 127
        %v145 = vand.u32 2147483647, %v137
        %v146 = vand.u32 %v145, 8388607
        %v147 = vor.u32 %v146, 8388608
        %v148 = vsub.s32 0, %v147
        %v149 = vadd.s32 %v144, 1
        %vm150 = vcmp.gt.s32.totalorder %v149, 0
        %v151 = vsel %vm150, %v149, 0
        %v152 = vshrl.u32 %v151, 5
        %v153 = vand.u32 %v151, 31
        %v154 = vsub.s32 32, %v153
        %v155 = vshrl.u32 683565275, %v154
        %v156 = vshll.u32 683565275, %v153
        %v157 = vshrl.u32 2475754826, %v154
        %v158 = vor.u32 %v156, %v157
        %v159 = vshll.u32 2475754826, %v153
        %v160 = vshrl.u32 2131351028, %v154
        %v161 = vor.u32 %v159, %v160
        %v162 = vshll.u32 2131351028, %v153
        %v163 = vshrl.u32 2102212464, %v154
        %v164 = vor.u32 %v162, %v163
        %v165 = vshll.u32 2102212464, %v153
        %v166 = vshrl.u32 920167782, %v154
        %v167 = vor.u32 %v165, %v166
        %v168 = vshll.u32 920167782, %v153
        %v169 = vshrl.u32 1326507024, %v154
        %v170 = vor.u32 %v168, %v169
        %vm171 = vcmp.lt.s32.totalorder %v152, 1
        %vm172 = vcmp.lt.s32.totalorder %v152, 2
        %vm173 = vcmp.lt.s32.totalorder %v152, 3
        %vm174 = vcmp.lt.s32.totalorder %v152, 4
        %v175 = vsel %vm171, %v155, %v158
        %v176 = vsel %vm174, %v164, 2102212464
        %v177 = vsel %vm173, %v161, %v176
        %v178 = vsel %vm172, %v175, %v177
        %v179 = vsel %vm171, %v158, %v161
        %v180 = vsel %vm174, %v167, 920167782
        %v181 = vsel %vm173, %v164, %v180
        %v182 = vsel %vm172, %v179, %v181
        %v183 = vsel %vm171, %v161, %v164
        %v184 = vsel %vm174, %v170, 1326507024
        %v185 = vsel %vm173, %v167, %v184
        %v186 = vsel %vm172, %v183, %v185
        %v187 = vshll.u32 %v147, 8
        %v188 = vand.u32 %v187, 65535
        %v189 = vshrl.u32 %v187, 16
        %v190 = vand.u32 %v186, 65535
        %v191 = vshrl.u32 %v186, 16
        %v192 = vmul.u32 %v188, %v190
        %v193 = vmul.u32 %v188, %v191
        %v194 = vmul.u32 %v189, %v190
        %v195 = vmul.u32 %v189, %v191
        %v196 = vshll.u32 %v193, 16
        %v197 = vshrl.u32 %v193, 16
        %v198 = vshll.u32 %v194, 16
        %v199 = vshrl.u32 %v194, 16
        %vm200 = vc.u32 %v192, %v196
        %v201 = vsel %vm200, 1, 0
        %v202 = vadd.s32 %v192, %v196
        %v203 = vadd.s32 %v195, %v201
        %vm204 = vc.u32 %v202, %v198
        %v205 = vsel %vm204, 1, 0
        %v206 = vadd.s32 %v202, %v198
        %v207 = vadd.s32 %v203, %v205
        %v208 = vadd.s32 %v207, %v197
        %v209 = vadd.s32 %v208, %v199
        %v210 = vand.u32 %v187, 65535
        %v211 = vshrl.u32 %v187, 16
        %v212 = vand.u32 %v182, 65535
        %v213 = vshrl.u32 %v182, 16
        %v214 = vmul.u32 %v210, %v212
        %v215 = vmul.u32 %v210, %v213
        %v216 = vmul.u32 %v211, %v212
        %v217 = vmul.u32 %v211, %v213
        %v218 = vshll.u32 %v215, 16
        %v219 = vshrl.u32 %v215, 16
        %v220 = vshll.u32 %v216, 16
        %v221 = vshrl.u32 %v216, 16
        %vm222 = vc.u32 %v214, %v218
        %v223 = vsel %vm222, 1, 0
        %v224 = vadd.s32 %v214, %v218
        %v225 = vadd.s32 %v217, %v223
        %vm226 = vc.u32 %v224, %v220
        %v227 = vsel %vm226, 1, 0
        %v228 = vadd.s32 %v224, %v220
        %v229 = vadd.s32 %v225, %v227
        %v230 = vadd.s32 %v229, %v219
        %v231 = vadd.s32 %v230, %v221
        %v232 = vmul.u32 %v187, %v178
        %v233 = vadd.s32 %v209, %v228
        %vm234 = vc.u32 %v209, %v228
        %v235 = vadd.s32 %v231, 1
        %v236 = vsel %vm234, %v235, %v231
        %v237 = vadd.s32 %v232, %v236
        %v238 = vadd.s32 %v237, 536870912
        %v239 = vshrl.u32 %v238, 30
        %v240 = vshll.u32 %v239, 30
        %v241 = vsub.s32 %v237, %v240
        %vm242 = vcmp.lt.s32.totalorder %v241, 0
        %v243 = vsub.s32 0, %v241
        %v244 = vsel %vm242, %v243, %v241
        %v245 = vclz %v244
        %v246 = vsub.s32 %v245, 2
        %vm247 = vcmp.gt.s32.totalorder 0, %v246
        %v248 = vsel %vm247, 0, %v246
        %v249 = vsub.s32 32, %v248
        %v250 = vshll.u32 %v241, %v248
        %v251 = vshrl.u32 %v233, %v249
        %v252 = vor.u32 %v250, %v251
        %v253 = vsub.s32 4294967266, %v248
        %v254 = vadd.s32 %v253, 127
        %v255 = vshll.u32 %v254, 23
        %v256 = vor.u32 4788187, %v255
        %v257 = vand.u32 2147483647, %v256
        %v259 = vcvt.s32.f32 %v252
        %v260 = vmul.f32 %v259, %v257
        %v261 = vxor.u32 %v260, 2147483648
        %v262 = vsel %vm141, %v261, %v260
        %v263 = vsub.s32 4, %v239
        %v264 = vsel %vm141, %v263, %v239
        %v265 = vsel %vm140, %v137, %v262
        %v266 = vsel %vm140, 0, %v264
        %v267 = vmul.f32 %v265, %v265
        %v268 = vmul.f32 %v267, -0.001358992
        %v269 = vadd.f32 %v268, 0.041655596
        %v270 = vmul.f32 %v267, %v269
        %v271 = vadd.f32 %v270, -0.4999988
        %v272 = vmul.f32 %v267, %v271
        %v273 = vadd.f32 1.0, %v272
        %v274 = vmul.f32 %v265, %v265
        %v275 = vmul.f32 %v274, -0.00019511016
        %v276 = vadd.f32 %v275, 0.008332121
        %v277 = vmul.f32 %v274, %v276
        %v278 = vadd.f32 %v277, -0.16666654
        %v279 = vmul.f32 %v274, %v278
        %v280 = vadd.f32 %v279, 1.0
        %v281 = vmul.f32 %v280, %v265
        %vm282 = vweird.f32 %v137
        %v283 = vadd.s32 %v266, 3
        %v284 = vand.u32 %v283, 3
        %vm285 = vcmp.lt.s32.totalorder %v284, 2
        %vm286 = vcmp.eq.s32.totalorder %v284, 0
        %v287 = vxor.u32 %v281, 2147483648
        %v288 = vsel %vm286, %v273, %v287
        %vm289 = vcmp.eq.s32.totalorder %v284, 2
        %v290 = vxor.u32 %v273, 2147483648
        %v291 = vsel %vm289, %v290, %v281
        %v292 = vsel %vm285, %v288, %v291
        %v293 = vsel %vm282, nan, %v292
        %v294 = vand.u32 2147483647, %v137
        %vm295 = vcmp.le.f32.partialorder %v294, 0.7853982
        %vm296 = vcmp.lt.s32.totalorder %v137, 0
        %v297 = vand.u32 %v137, 2139095040
        %v298 = vshrl.u32 %v297, 23
        %v299 = vsub.s32 %v298, 127
        %v300 = vand.u32 2147483647, %v137
        %v301 = vand.u32 %v300, 8388607
        %v302 = vor.u32 %v301, 8388608
        %v303 = vsub.s32 0, %v302
        %v304 = vadd.s32 %v299, 1
        %vm305 = vcmp.gt.s32.totalorder %v304, 0
        %v306 = vsel %vm305, %v304, 0
        %v307 = vshrl.u32 %v306, 5
        %v308 = vand.u32 %v306, 31
        %v309 = vsub.s32 32, %v308
        %v310 = vshrl.u32 683565275, %v309
        %v311 = vshll.u32 683565275, %v308
        %v312 = vshrl.u32 2475754826, %v309
        %v313 = vor.u32 %v311, %v312
        %v314 = vshll.u32 2475754826, %v308
        %v315 = vshrl.u32 2131351028, %v309
        %v316 = vor.u32 %v314, %v315
        %v317 = vshll.u32 2131351028, %v308
        %v318 = vshrl.u32 2102212464, %v309
        %v319 = vor.u32 %v317, %v318
        %v320 = vshll.u32 2102212464, %v308
        %v321 = vshrl.u32 920167782, %v309
        %v322 = vor.u32 %v320, %v321
        %v323 = vshll.u32 920167782, %v308
        %v324 = vshrl.u32 1326507024, %v309
        %v325 = vor.u32 %v323, %v324
        %vm326 = vcmp.lt.s32.totalorder %v307, 1
        %vm327 = vcmp.lt.s32.totalorder %v307, 2
        %vm328 = vcmp.lt.s32.totalorder %v307, 3
        %vm329 = vcmp.lt.s32.totalorder %v307, 4
        %v330 = vsel %vm326, %v310, %v313
        %v331 = vsel %vm329, %v319, 2102212464
        %v332 = vsel %vm328, %v316, %v331
        %v333 = vsel %vm327, %v330, %v332
        %v334 = vsel %vm326, %v313, %v316
        %v335 = vsel %vm329, %v322, 920167782
        %v336 = vsel %vm328, %v319, %v335
        %v337 = vsel %vm327, %v334, %v336
        %v338 = vsel %vm326, %v316, %v319
        %v339 = vsel %vm329, %v325, 1326507024
        %v340 = vsel %vm328, %v322, %v339
        %v341 = vsel %vm327, %v338, %v340
        %v342 = vshll.u32 %v302, 8
        %v343 = vand.u32 %v342, 65535
        %v344 = vshrl.u32 %v342, 16
        %v345 = vand.u32 %v341, 65535
        %v346 = vshrl.u32 %v341, 16
        %v347 = vmul.u32 %v343, %v345
        %v348 = vmul.u32 %v343, %v346
        %v349 = vmul.u32 %v344, %v345
        %v350 = vmul.u32 %v344, %v346
        %v351 = vshll.u32 %v348, 16
        %v352 = vshrl.u32 %v348, 16
        %v353 = vshll.u32 %v349, 16
        %v354 = vshrl.u32 %v349, 16
        %vm355 = vc.u32 %v347, %v351
        %v356 = vsel %vm355, 1, 0
        %v357 = vadd.s32 %v347, %v351
        %v358 = vadd.s32 %v350, %v356
        %vm359 = vc.u32 %v357, %v353
        %v360 = vsel %vm359, 1, 0
        %v361 = vadd.s32 %v357, %v353
        %v362 = vadd.s32 %v358, %v360
        %v363 = vadd.s32 %v362, %v352
        %v364 = vadd.s32 %v363, %v354
        %v365 = vand.u32 %v342, 65535
        %v366 = vshrl.u32 %v342, 16
        %v367 = vand.u32 %v337, 65535
        %v368 = vshrl.u32 %v337, 16
        %v369 = vmul.u32 %v365, %v367
        %v370 = vmul.u32 %v365, %v368
        %v371 = vmul.u32 %v366, %v367
        %v372 = vmul.u32 %v366, %v368
        %v373 = vshll.u32 %v370, 16
        %v374 = vshrl.u32 %v370, 16
        %v375 = vshll.u32 %v371, 16
        %v376 = vshrl.u32 %v371, 16
        %vm377 = vc.u32 %v369, %v373
        %v378 = vsel %vm377, 1, 0
        %v379 = vadd.s32 %v369, %v373
        %v380 = vadd.s32 %v372, %v378
        %vm381 = vc.u32 %v379, %v375
        %v382 = vsel %vm381, 1, 0
        %v383 = vadd.s32 %v379, %v375
        %v384 = vadd.s32 %v380, %v382
        %v385 = vadd.s32 %v384, %v374
        %v386 = vadd.s32 %v385, %v376
        %v387 = vmul.u32 %v342, %v333
        %v388 = vadd.s32 %v364, %v383
        %vm389 = vc.u32 %v364, %v383
        %v390 = vadd.s32 %v386, 1
        %v391 = vsel %vm389, %v390, %v386
        %v392 = vadd.s32 %v387, %v391
        %v393 = vadd.s32 %v392, 536870912
        %v394 = vshrl.u32 %v393, 30
        %v395 = vshll.u32 %v394, 30
        %v396 = vsub.s32 %v392, %v395
        %vm397 = vcmp.lt.s32.totalorder %v396, 0
        %v398 = vsub.s32 0, %v396
        %v399 = vsel %vm397, %v398, %v396
        %v400 = vclz %v399
        %v401 = vsub.s32 %v400, 2
        %vm402 = vcmp.gt.s32.totalorder 0, %v401
        %v403 = vsel %vm402, 0, %v401
        %v404 = vsub.s32 32, %v403
        %v405 = vshll.u32 %v396, %v403
        %v406 = vshrl.u32 %v388, %v404
        %v407 = vor.u32 %v405, %v406
        %v408 = vsub.s32 4294967266, %v403
        %v409 = vadd.s32 %v408, 127
        %v410 = vshll.u32 %v409, 23
        %v411 = vor.u32 4788187, %v410
        %v412 = vand.u32 2147483647, %v411
        %v414 = vcvt.s32.f32 %v407
        %v415 = vmul.f32 %v414, %v412
        %v416 = vxor.u32 %v415, 2147483648
        %v417 = vsel %vm296, %v416, %v415
        %v418 = vsub.s32 4, %v394
        %v419 = vsel %vm296, %v418, %v394
        %v420 = vsel %vm295, %v137, %v417
        %v421 = vsel %vm295, 0, %v419
        %v422 = vmul.f32 %v420, %v420
        %v423 = vmul.f32 %v422, -0.001358992
        %v424 = vadd.f32 %v423, 0.041655596
        %v425 = vmul.f32 %v422, %v424
        %v426 = vadd.f32 %v425, -0.4999988
        %v427 = vmul.f32 %v422, %v426
        %v428 = vadd.f32 1.0, %v427
        %v429 = vmul.f32 %v420, %v420
        %v430 = vmul.f32 %v429, -0.00019511016
        %v431 = vadd.f32 %v430, 0.008332121
        %v432 = vmul.f32 %v429, %v431
        %v433 = vadd.f32 %v432, -0.16666654
        %v434 = vmul.f32 %v429, %v433
        %v435 = vadd.f32 %v434, 1.0
        %v436 = vmul.f32 %v435, %v420
        %vm437 = vweird.f32 %v137
        %v438 = vand.u32 %v421, 3
        %vm439 = vcmp.lt.s32.totalorder %v438, 2
        %vm440 = vcmp.eq.s32.totalorder %v438, 0
        %v441 = vxor.u32 %v436, 2147483648
        %v442 = vsel %vm440, %v428, %v441
        %vm443 = vcmp.eq.s32.totalorder %v438, 2
        %v444 = vxor.u32 %v428, 2147483648
        %v445 = vsel %vm443, %v444, %v436
        %v446 = vsel %vm439, %v442, %v445
        %v447 = vsel %vm437, nan, %v446
        %v448 = vmul.f32 %v293, 2.0
        %v449 = vmul.f32 %v448, %v447
        %v450 = vmul.f32 %v448, %v293
        %v451 = vsub.f32 1.0, %v450
        %v452 = vmul.f32 %v449, 2.0
        %v453 = vmul.f32 %v452, %v451
        %v454 = vmul.f32 %v452, %v449
        %v455 = vsub.f32 1.0, %v454
        %v456 = vmul.f32 %v453, 2.0
        %v457 = vmul.f32 %v456, %v455
        %v458 = vmul.f32 %v456, %v453
        %v459 = vsub.f32 1.0, %v458
        %460 = vst [vmem:[#allocation2 + $0x4] sm:$0xf] %v293
        %461 = vst [vmem:[#allocation2 + $0x8] sm:$0xf] %v447
        %462 = vst [vmem:[#allocation2 + $0xc] sm:$0xf] %v449
        %463 = vst [vmem:[#allocation2 + $0x10] sm:$0xf] %v451
        %464 = vst [vmem:[#allocation2 + $0x14] sm:$0xf] %v453
        %465 = vst [vmem:[#allocation2 + $0x18] sm:$0xf] %v455
        %466 = vst [vmem:[#allocation2 + $0x1c] sm:$0xf] %v457
        %467 = vst [vmem:[#allocation2 + $0x20] sm:$0xf] %v459
        %v468 = vld [vmem:[#allocation2] sm:$0xff]
        %v469 = vld [vmem:[#allocation2 + $0x8] sm:$0xff]
        %v470 = vld [vmem:[#allocation2 + $0x10] sm:$0xff]
        %v471 = vld [vmem:[#allocation2 + $0x18] sm:$0xff]
        %v472 = vld [vmem:[#allocation2 + $0x20] sm:$0xff]
        %v473 = vld [vmem:[#allocation2 + $0x28] sm:$0xff]
        %v474 = vld [vmem:[#allocation2 + $0x30] sm:$0xff]
        %v475 = vld [vmem:[#allocation2 + $0x38] sm:$0xff]
        %v476 = vld [vmem:[#allocation2 + $0x40] sm:$0xff]
        %v477 = vld [vmem:[#allocation2 + $0x48] sm:$0xff]
        %v478 = vld [vmem:[#allocation2 + $0x50] sm:$0xff]
        %v479 = vld [vmem:[#allocation2 + $0x58] sm:$0xff]
        %v480 = vld [vmem:[#allocation2 + $0x60] sm:$0xff]
        %v481 = vld [vmem:[#allocation2 + $0x68] sm:$0xff]
        %v482 = vld [vmem:[#allocation2 + $0x70] sm:$0xff]
        %v483 = vld [vmem:[#allocation2 + $0x78] sm:$0xff]
        %484 = vxpose.xlu0.b32.start [1/16] %v468, 128
        %485 = vxpose.xlu0.b32.cont [2/16] %v469, 128
        %486 = vxpose.xlu0.b32.cont [3/16] %v470, 128
        %487 = vxpose.xlu0.b32.cont [4/16] %v471, 128
        %488 = vxpose.xlu0.b32.cont [5/16] %v472, 128
        %489 = vxpose.xlu0.b32.cont [6/16] %v473, 128
        %490 = vxpose.xlu0.b32.cont [7/16] %v474, 128
        %491 = vxpose.xlu0.b32.cont [8/16] %v475, 128
        %492 = vxpose.xlu0.b32.cont [9/16] %v476, 128
        %493 = vxpose.xlu0.b32.cont [10/16] %v477, 128
        %494 = vxpose.xlu0.b32.cont [11/16] %v478, 128
        %495 = vxpose.xlu0.b32.cont [12/16] %v479, 128
        %496 = vxpose.xlu0.b32.cont [13/16] %v480, 128
        %497 = vxpose.xlu0.b32.cont [14/16] %v481, 128
        %498 = vxpose.xlu0.b32.cont [15/16] %v482, 128
        %499 = vxpose.xlu0.b32.end [16/16] %v483, 128
        %v500 = vpop.trf.xlu0
        %v501 = vpop.trf.xlu0
        %v502 = vpop.trf.xlu0
        %v503 = vpop.trf.xlu0
        %v504 = vpop.trf.xlu0
        %v505 = vpop.trf.xlu0
        %v506 = vpop.trf.xlu0
        %v507 = vpop.trf.xlu0
        %v508 = vpop.trf.xlu0
        %v509 = vpop.trf.xlu0
        %v510 = vpop.trf.xlu0
        %v511 = vpop.trf.xlu0
        %v512 = vpop.trf.xlu0
        %v513 = vpop.trf.xlu0
        %v514 = vpop.trf.xlu0
        %v515 = vpop.trf.xlu0
        %vm516 = vcmask 293888
        %517 = vst.msk [vmem:[%s135] sm:$0xff] %vm516, %v500
        %518 = vst.msk [vmem:[%s135 + $0x8] sm:$0xff] %vm516, %v501
        %519 = vst.msk [vmem:[%s135 + $0x10] sm:$0xff] %vm516, %v502
        %520 = vst.msk [vmem:[%s135 + $0x18] sm:$0xff] %vm516, %v503
        %521 = vst.msk [vmem:[%s135 + $0x20] sm:$0xff] %vm516, %v504
        %522 = vst.msk [vmem:[%s135 + $0x28] sm:$0xff] %vm516, %v505
        %523 = vst.msk [vmem:[%s135 + $0x30] sm:$0xff] %vm516, %v506
        %524 = vst.msk [vmem:[%s135 + $0x38] sm:$0xff] %vm516, %v507
        %525 = vst.msk [vmem:[%s135 + $0x40] sm:$0xff] %vm516, %v508
        %526 = vst.msk [vmem:[%s135 + $0x48] sm:$0xff] %vm516, %v509
        %527 = vst.msk [vmem:[%s135 + $0x50] sm:$0xff] %vm516, %v510
        %528 = vst.msk [vmem:[%s135 + $0x58] sm:$0xff] %vm516, %v511
        %529 = vst.msk [vmem:[%s135 + $0x60] sm:$0xff] %vm516, %v512
        %530 = vst.msk [vmem:[%s135 + $0x68] sm:$0xff] %vm516, %v513
        %531 = vst.msk [vmem:[%s135 + $0x70] sm:$0xff] %vm516, %v514
        %532 = vst.msk [vmem:[%s135 + $0x78] sm:$0xff] %vm516, %v515
        %s533 = smul.u32 16, %s15
        %p534 = scmp.lt.s32.totalorder %s533, 31
        %s535 = scalar_select %p534, %s533, 31
        %s536 = smul.addr %s535, 8
        %s537 = scalar_lea.vmem %s1, %s536
        // Predicated region
        $region29: #{tpu_custom_call.1} parent=23 // pred_check
          %p538 = pneg %p59
        $region30: #{tpu_custom_call.1} parent=23 // pred_check_branch
          %540 = sbr.rel (%p538) target = $region32
        $region31: #{tpu_custom_call.1} parent=23 // pred_region
          %s541 = smul.u32 16, %s15
        $region32: #{tpu_custom_call.1} parent=23 // pred_fallthru
          _
      $region24: #{tpu_custom_call.1} parent=5 // pred_fallthru
        _
      %p542 = scmp.le.s32.totalorder 2, %s10
      // Predicated region
      $region33: #{tpu_custom_call.1} parent=5 // pred_check
        %p543 = pneg %p542
      $region34: #{tpu_custom_call.1} parent=5 // pred_check_branch
        %545 = sbr.rel (%p543) target = $region36
      $region35: #{tpu_custom_call.1} parent=5 // pred_region
        %s546 = ssub.s32 %s10, 2
        // Predicated region
        $region37: #{tpu_custom_call.1} parent=35 // pred_check
          %p547 = pneg %p65
        $region38: #{tpu_custom_call.1} parent=35 // pred_check_branch
          %549 = sbr.rel (%p547) target = $region40
        $region39: #{tpu_custom_call.1} parent=35 // pred_region
          %s550 = smul.u32 16, %s16
          %p551 = scmp.lt.s32.totalorder %s550, 31
          %s552 = scalar_select %p551, %s550, 31
          %s553 = smul.addr %s552, 8
          %s554 = scalar_lea.vmem %s1, %s553
        $region40: #{tpu_custom_call.1} parent=35 // pred_fallthru
          _
      $region36: #{tpu_custom_call.1} parent=5 // pred_fallthru
        _
    $region6: #{tpu_custom_call.1} parent=1 // loop_footer
      %s14 = sadd.s32 1, %s10
    $region7: #{tpu_custom_call.1} parent=1 // loop_footer_branch
      %9 = sbr.rel target = $region3
    $region8: #{tpu_custom_call.1} parent=1 // loop_exit
      _
    %555 = vsyncpa [#allocation4], 1
    %s556 = scalar_lea.sflag [#allocation4], 1
    %557 = vsyncpa %s556, 1

// kernel: tpu_custom_call.1
$region0: #{tpu_custom_call.1}
  #allocation0 [shape = 'u32[]', space=smem, size = 0x4, offset = 0x4, fixed_abs, tag = 'smem constant byte address 0x4 - core index']
  #allocation1 [shape = 'u32[72,128]{1,0:T(1,128)}', space=vmem, size = 0x9000, scoped, tag = 'internal scratch']
  %s0 = inlined_call_operand.hbm [shape: f32[4,256], index: 0, kind: input, shape index: {}]
  %s1 = inlined_call_operand.hbm [shape: f32[36,256], index: 1, kind: output, shape index: {}]
  %s2 = sld [smem:[#allocation0]]
  $region41: #{tpu_custom_call.1} parent=0
    _
  %s4 = ssub.s32 1, %s2
  %s5 = scalar_select 0, %s4, %s2
  $region1: #{tpu_custom_call.1} parent=0
    #allocation2 [shape = 'u8[4096]{0}', space=vmem, size = 0x1000, scoped, tag = 'input window, operand 0']
    #allocation3 [shape = 's32[2]{0}', space=sflag, size = 0x8, scoped, tag = 'scoped memory for tpu_custom_call.1']
    #allocation4 [shape = 's32[2]{0}', space=sflag, size = 0x8, scoped, tag = 'scoped memory for tpu_custom_call.1']
    #allocation5 [shape = 'u8[40960]{0}', space=vmem, size = 0xa000, scoped, tag = 'output window, operand 0']
    %6 = vsyncpa [#allocation3], 0
    %s7 = scalar_lea.sflag [#allocation3], 1
    %8 = vsyncpa %s7, 0
    %9 = vsyncpa [#allocation4], 0
    %s10 = scalar_lea.sflag [#allocation4], 1
    %11 = vsyncpa %s10, 0
    loop: start=0, step=1, limit=4
    $region2: #{tpu_custom_call.1} parent=1 // loop_pre_header
      _
    $region3: #{tpu_custom_call.1} parent=1 // loop_header
      %s13 = sphi 0, %s17
      %p14 = scmp.ge.s32.totalorder %s13, 4
      %s23 = sphi 0, %s25
      %s26 = sphi 0, %s23
      %s27 = sphi 0, %s26
      %s43 = sphi 0, %s27
      %s49 = sphi 0, %s51
      %s52 = sphi 0, %s49
      %s53 = sphi 0, %s52
      %s69 = sphi 0, %s53
    $region4: #{tpu_custom_call.1} parent=1 // loop_header_branch
      %16 = sbr.rel (%p14) target = $region8
    $region5: #{tpu_custom_call.1} parent=1 // loop_body
      %s18 = ssub.s32 %s13, 1
      %s19 = ssub.s32 %s13, 2
      %s20 = sadd.s32 %s13, 1
      %s21 = ssub.s32 %s13, %s20
      %p22 = scmp.eq.s32.totalorder %s21, 0
      %s24 = sadd.s32 %s23, 1
      %s25 = scalar_select %p22, %s23, %s24
      %p28 = pneg %p22
      %p29 = scmp.eq.s32.totalorder %s13, 1
      %p30 = por %p28, %p29
      %p31 = scmp.ne.s32.totalorder %s23, %s26
      %p32 = scmp.eq.s32.totalorder %s13, 0
      %p33 = por %p31, %p32
      %p34 = scmp.ne.s32.totalorder %s23, %s26
      %p35 = scmp.eq.s32.totalorder %s18, 1
      %p36 = por %p34, %p35
      %p37 = scmp.ne.s32.totalorder %s26, %s27
      %p38 = scmp.eq.s32.totalorder %s18, 0
      %p39 = por %p37, %p38
      %p40 = scmp.ne.s32.totalorder %s26, %s27
      %p41 = scmp.eq.s32.totalorder %s19, 1
      %p42 = por %p40, %p41
      %p44 = scmp.ne.s32.totalorder %s27, %s43
      %p45 = scmp.eq.s32.totalorder %s19, 0
      %p46 = por %p44, %p45
      %s47 = ssub.s32 %s13, %s20
      %p48 = scmp.eq.s32.totalorder %s47, 0
      %s50 = sadd.s32 %s49, 1
      %s51 = scalar_select %p48, %s49, %s50
      %p54 = pneg %p48
      %p55 = scmp.eq.s32.totalorder %s13, 1
      %p56 = por %p54, %p55
      %p57 = scmp.ne.s32.totalorder %s49, %s52
      %p58 = scmp.eq.s32.totalorder %s13, 0
      %p59 = por %p57, %p58
      %p60 = scmp.ne.s32.totalorder %s49, %s52
      %p61 = scmp.eq.s32.totalorder %s18, 1
      %p62 = por %p60, %p61
      %p63 = scmp.ne.s32.totalorder %s52, %s53
      %p64 = scmp.eq.s32.totalorder %s18, 0
      %p65 = por %p63, %p64
      %p66 = scmp.ne.s32.totalorder %s52, %s53
      %p67 = scmp.eq.s32.totalorder %s19, 1
      %p68 = por %p66, %p67
      %p70 = scmp.ne.s32.totalorder %s53, %s69
      %p71 = scmp.eq.s32.totalorder %s19, 0
      %p72 = por %p70, %p71
      %p73 = scmp.le.s32.totalorder 1, %s13
      %p74 = scmp.lt.s32.totalorder %s13, 3
      %p75 = pnand %p73, %p74
      %p76 = pneg %p75
      // Predicated region
      $region9: #{tpu_custom_call.1} parent=5 // pred_check
        _
      $region10: #{tpu_custom_call.1} parent=5 // pred_check_branch
        %78 = sbr.rel (%p75) target = $region12
      $region11: #{tpu_custom_call.1} parent=5 // pred_region
        %s79 = ssub.s32 %s13, 1
      $region12: #{tpu_custom_call.1} parent=5 // pred_fallthru
        _
      %p80 = scmp.lt.s32.totalorder %s13, 2
      // Predicated region
      $region13: #{tpu_custom_call.1} parent=5 // pred_check
        %p81 = pneg %p80
      $region14: #{tpu_custom_call.1} parent=5 // pred_check_branch
        %83 = sbr.rel (%p81) target = $region16
      $region15: #{tpu_custom_call.1} parent=5 // pred_region
        // Predicated region
        $region17: #{tpu_custom_call.1} parent=15 // pred_check
          %p84 = pneg %p33
        $region18: #{tpu_custom_call.1} parent=15 // pred_check_branch
          %86 = sbr.rel (%p84) target = $region20
        $region19: #{tpu_custom_call.1} parent=15 // pred_region
          %s87 = sand.u32 %s23, 1
          %s88 = scalar_lea.sflag [#allocation3], %s87
          %s89 = sand.u32 %s23, 1
          %s90 = smul.addr %s89, 4
          %s91 = scalar_lea.vmem [#allocation2], %s90
          %93 = vsyncadd %s88, 0
          %s94 = smul.addr %s13, 4
          %s95 = scalar_lea.hbm %s0, %s94
          %s97 = sshll.u32 %s95, 4
          %s98 = int_to_ptr.hbm [resolvable:$true] %s97
          %s99 = sshll.u32 %s91, 4
          %s100 = int_to_ptr.vmem [resolvable:$true] %s99
          %102 = dma.hbm_to_vmem [thread:$0]  %s98, 64, %s100, %s88
        $region20: #{tpu_custom_call.1} parent=15 // pred_fallthru
          _
      $region16: #{tpu_custom_call.1} parent=5 // pred_fallthru
        _
      %p103 = scmp.le.s32.totalorder 1, %s13
      %p104 = scmp.lt.s32.totalorder %s13, 3
      %p105 = pnand %p103, %p104
      %p106 = pneg %p105
      // Predicated region
      $region21: #{tpu_custom_call.1} parent=5 // pred_check
        _
      $region22: #{tpu_custom_call.1} parent=5 // pred_check_branch
        %108 = sbr.rel (%p105) target = $region24
      $region23: #{tpu_custom_call.1} parent=5 // pred_region
        %s109 = ssub.s32 %s13, 1
        %s110 = sand.u32 %s26, 1
        %s111 = scalar_lea.sflag [#allocation3], %s110
        %s112 = sand.u32 %s26, 1
        %s113 = smul.addr %s112, 4
        %s114 = scalar_lea.vmem [#allocation2], %s113
        // Predicated region
        $region25: #{tpu_custom_call.1} parent=23 // pred_check
          %p115 = pneg %p39
        $region26: #{tpu_custom_call.1} parent=23 // pred_check_branch
          %117 = sbr.rel (%p115) target = $region28
        $region27: #{tpu_custom_call.1} parent=23 // pred_region
          %119 = dma.done %s111, 64
        $region28: #{tpu_custom_call.1} parent=23 // pred_fallthru
          _
        %s120 = sand.u32 %s26, 1
        %s121 = scalar_lea.sflag [#allocation3], %s120
        %s122 = sand.u32 %s26, 1
        %s123 = smul.addr %s122, 4
        %s124 = scalar_lea.vmem [#allocation2], %s123
        %p125 = pneg %p39
        %p126 = pneg %p36
        %p127 = pneg %p65
        %p128 = pneg %p62
        %s129 = sand.u32 %s52, 1
        %s130 = scalar_lea.sflag [#allocation4], %s129
        %s131 = sand.u32 %s52, 1
        %s132 = smul.addr %s131, 40
        %s133 = scalar_lea.vmem [#allocation5], %s132
        %v134 = vld [vmem:[%s114] sm:$0xf]
        %135 = vst [vmem:[%s133] sm:$0xf] %v134
        %v136 = vand.u32 2147483647, %v134
        %vm137 = vcmp.le.f32.partialorder %v136, 0.7853982
        %vm138 = vcmp.lt.s32.totalorder %v134, 0
        %v139 = vand.u32 %v134, 2139095040
        %v140 = vshrl.u32 %v139, 23
        %v141 = vsub.s32 %v140, 127
        %v142 = vand.u32 2147483647, %v134
        %v143 = vand.u32 %v142, 8388607
        %v144 = vor.u32 %v143, 8388608
        %v145 = vsub.s32 0, %v144
        %v146 = vadd.s32 %v141, 1
        %vm147 = vcmp.gt.s32.totalorder %v146, 0
        %v148 = vsel %vm147, %v146, 0
        %v149 = vshrl.u32 %v148, 5
        %v150 = vand.u32 %v148, 31
        %v151 = vsub.s32 32, %v150
        %v152 = vshrl.u32 683565275, %v151
        %v153 = vshll.u32 683565275, %v150
        %v154 = vshrl.u32 2475754826, %v151
        %v155 = vor.u32 %v153, %v154
        %v156 = vshll.u32 2475754826, %v150
        %v157 = vshrl.u32 2131351028, %v151
        %v158 = vor.u32 %v156, %v157
        %v159 = vshll.u32 2131351028, %v150
        %v160 = vshrl.u32 2102212464, %v151
        %v161 = vor.u32 %v159, %v160
        %v162 = vshll.u32 2102212464, %v150
        %v163 = vshrl.u32 920167782, %v151
        %v164 = vor.u32 %v162, %v163
        %v165 = vshll.u32 920167782, %v150
        %v166 = vshrl.u32 1326507024, %v151
        %v167 = vor.u32 %v165, %v166
        %vm168 = vcmp.lt.s32.totalorder %v149, 1
        %vm169 = vcmp.lt.s32.totalorder %v149, 2
        %vm170 = vcmp.lt.s32.totalorder %v149, 3
        %vm171 = vcmp.lt.s32.totalorder %v149, 4
        %v172 = vsel %vm168, %v152, %v155
        %v173 = vsel %vm171, %v161, 2102212464
        %v174 = vsel %vm170, %v158, %v173
        %v175 = vsel %vm169, %v172, %v174
        %v176 = vsel %vm168, %v155, %v158
        %v177 = vsel %vm171, %v164, 920167782
        %v178 = vsel %vm170, %v161, %v177
        %v179 = vsel %vm169, %v176, %v178
        %v180 = vsel %vm168, %v158, %v161
        %v181 = vsel %vm171, %v167, 1326507024
        %v182 = vsel %vm170, %v164, %v181
        %v183 = vsel %vm169, %v180, %v182
        %v184 = vshll.u32 %v144, 8
        %v185 = vand.u32 %v184, 65535
        %v186 = vshrl.u32 %v184, 16
        %v187 = vand.u32 %v183, 65535
        %v188 = vshrl.u32 %v183, 16
        %v189 = vmul.u32 %v185, %v187
        %v190 = vmul.u32 %v185, %v188
        %v191 = vmul.u32 %v186, %v187
        %v192 = vmul.u32 %v186, %v188
        %v193 = vshll.u32 %v190, 16
        %v194 = vshrl.u32 %v190, 16
        %v195 = vshll.u32 %v191, 16
        %v196 = vshrl.u32 %v191, 16
        %vm197 = vc.u32 %v189, %v193
        %v198 = vsel %vm197, 1, 0
        %v199 = vadd.s32 %v189, %v193
        %v200 = vadd.s32 %v192, %v198
        %vm201 = vc.u32 %v199, %v195
        %v202 = vsel %vm201, 1, 0
        %v203 = vadd.s32 %v199, %v195
        %v204 = vadd.s32 %v200, %v202
        %v205 = vadd.s32 %v204, %v194
        %v206 = vadd.s32 %v205, %v196
        %v207 = vand.u32 %v184, 65535
        %v208 = vshrl.u32 %v184, 16
        %v209 = vand.u32 %v179, 65535
        %v210 = vshrl.u32 %v179, 16
        %v211 = vmul.u32 %v207, %v209
        %v212 = vmul.u32 %v207, %v210
        %v213 = vmul.u32 %v208, %v209
        %v214 = vmul.u32 %v208, %v210
        %v215 = vshll.u32 %v212, 16
        %v216 = vshrl.u32 %v212, 16
        %v217 = vshll.u32 %v213, 16
        %v218 = vshrl.u32 %v213, 16
        %vm219 = vc.u32 %v211, %v215
        %v220 = vsel %vm219, 1, 0
        %v221 = vadd.s32 %v211, %v215
        %v222 = vadd.s32 %v214, %v220
        %vm223 = vc.u32 %v221, %v217
        %v224 = vsel %vm223, 1, 0
        %v225 = vadd.s32 %v221, %v217
        %v226 = vadd.s32 %v222, %v224
        %v227 = vadd.s32 %v226, %v216
        %v228 = vadd.s32 %v227, %v218
        %v229 = vmul.u32 %v184, %v175
        %v230 = vadd.s32 %v206, %v225
        %vm231 = vc.u32 %v206, %v225
        %v232 = vadd.s32 %v228, 1
        %v233 = vsel %vm231, %v232, %v228
        %v234 = vadd.s32 %v229, %v233
        %v235 = vadd.s32 %v234, 536870912
        %v236 = vshrl.u32 %v235, 30
        %v237 = vshll.u32 %v236, 30
        %v238 = vsub.s32 %v234, %v237
        %vm239 = vcmp.lt.s32.totalorder %v238, 0
        %v240 = vsub.s32 0, %v238
        %v241 = vsel %vm239, %v240, %v238
        %v242 = vclz %v241
        %v243 = vsub.s32 %v242, 2
        %vm244 = vcmp.gt.s32.totalorder 0, %v243
        %v245 = vsel %vm244, 0, %v243
        %v246 = vsub.s32 32, %v245
        %v247 = vshll.u32 %v238, %v245
        %v248 = vshrl.u32 %v230, %v246
        %v249 = vor.u32 %v247, %v248
        %v250 = vsub.s32 4294967266, %v245
        %v251 = vadd.s32 %v250, 127
        %v252 = vshll.u32 %v251, 23
        %v253 = vor.u32 4788187, %v252
        %v254 = vand.u32 2147483647, %v253
        %v256 = vcvt.s32.f32 %v249
        %v257 = vmul.f32 %v256, %v254
        %v258 = vxor.u32 %v257, 2147483648
        %v259 = vsel %vm138, %v258, %v257
        %v260 = vsub.s32 4, %v236
        %v261 = vsel %vm138, %v260, %v236
        %v262 = vsel %vm137, %v134, %v259
        %v263 = vsel %vm137, 0, %v261
        %v264 = vmul.f32 %v262, %v262
        %v265 = vmul.f32 %v264, -0.001358992
        %v266 = vadd.f32 %v265, 0.041655596
        %v267 = vmul.f32 %v264, %v266
        %v268 = vadd.f32 %v267, -0.4999988
        %v269 = vmul.f32 %v264, %v268
        %v270 = vadd.f32 1.0, %v269
        %v271 = vmul.f32 %v262, %v262
        %v272 = vmul.f32 %v271, -0.00019511016
        %v273 = vadd.f32 %v272, 0.008332121
        %v274 = vmul.f32 %v271, %v273
        %v275 = vadd.f32 %v274, -0.16666654
        %v276 = vmul.f32 %v271, %v275
        %v277 = vadd.f32 %v276, 1.0
        %v278 = vmul.f32 %v277, %v262
        %vm279 = vweird.f32 %v134
        %v280 = vadd.s32 %v263, 3
        %v281 = vand.u32 %v280, 3
        %vm282 = vcmp.lt.s32.totalorder %v281, 2
        %vm283 = vcmp.eq.s32.totalorder %v281, 0
        %v284 = vxor.u32 %v278, 2147483648
        %v285 = vsel %vm283, %v270, %v284
        %vm286 = vcmp.eq.s32.totalorder %v281, 2
        %v287 = vxor.u32 %v270, 2147483648
        %v288 = vsel %vm286, %v287, %v278
        %v289 = vsel %vm282, %v285, %v288
        %v290 = vsel %vm279, nan, %v289
        %v291 = vand.u32 2147483647, %v134
        %vm292 = vcmp.le.f32.partialorder %v291, 0.7853982
        %vm293 = vcmp.lt.s32.totalorder %v134, 0
        %v294 = vand.u32 %v134, 2139095040
        %v295 = vshrl.u32 %v294, 23
        %v296 = vsub.s32 %v295, 127
        %v297 = vand.u32 2147483647, %v134
        %v298 = vand.u32 %v297, 8388607
        %v299 = vor.u32 %v298, 8388608
        %v300 = vsub.s32 0, %v299
        %v301 = vadd.s32 %v296, 1
        %vm302 = vcmp.gt.s32.totalorder %v301, 0
        %v303 = vsel %vm302, %v301, 0
        %v304 = vshrl.u32 %v303, 5
        %v305 = vand.u32 %v303, 31
        %v306 = vsub.s32 32, %v305
        %v307 = vshrl.u32 683565275, %v306
        %v308 = vshll.u32 683565275, %v305
        %v309 = vshrl.u32 2475754826, %v306
        %v310 = vor.u32 %v308, %v309
        %v311 = vshll.u32 2475754826, %v305
        %v312 = vshrl.u32 2131351028, %v306
        %v313 = vor.u32 %v311, %v312
        %v314 = vshll.u32 2131351028, %v305
        %v315 = vshrl.u32 2102212464, %v306
        %v316 = vor.u32 %v314, %v315
        %v317 = vshll.u32 2102212464, %v305
        %v318 = vshrl.u32 920167782, %v306
        %v319 = vor.u32 %v317, %v318
        %v320 = vshll.u32 920167782, %v305
        %v321 = vshrl.u32 1326507024, %v306
        %v322 = vor.u32 %v320, %v321
        %vm323 = vcmp.lt.s32.totalorder %v304, 1
        %vm324 = vcmp.lt.s32.totalorder %v304, 2
        %vm325 = vcmp.lt.s32.totalorder %v304, 3
        %vm326 = vcmp.lt.s32.totalorder %v304, 4
        %v327 = vsel %vm323, %v307, %v310
        %v328 = vsel %vm326, %v316, 2102212464
        %v329 = vsel %vm325, %v313, %v328
        %v330 = vsel %vm324, %v327, %v329
        %v331 = vsel %vm323, %v310, %v313
        %v332 = vsel %vm326, %v319, 920167782
        %v333 = vsel %vm325, %v316, %v332
        %v334 = vsel %vm324, %v331, %v333
        %v335 = vsel %vm323, %v313, %v316
        %v336 = vsel %vm326, %v322, 1326507024
        %v337 = vsel %vm325, %v319, %v336
        %v338 = vsel %vm324, %v335, %v337
        %v339 = vshll.u32 %v299, 8
        %v340 = vand.u32 %v339, 65535
        %v341 = vshrl.u32 %v339, 16
        %v342 = vand.u32 %v338, 65535
        %v343 = vshrl.u32 %v338, 16
        %v344 = vmul.u32 %v340, %v342
        %v345 = vmul.u32 %v340, %v343
        %v346 = vmul.u32 %v341, %v342
        %v347 = vmul.u32 %v341, %v343
        %v348 = vshll.u32 %v345, 16
        %v349 = vshrl.u32 %v345, 16
        %v350 = vshll.u32 %v346, 16
        %v351 = vshrl.u32 %v346, 16
        %vm352 = vc.u32 %v344, %v348
        %v353 = vsel %vm352, 1, 0
        %v354 = vadd.s32 %v344, %v348
        %v355 = vadd.s32 %v347, %v353
        %vm356 = vc.u32 %v354, %v350
        %v357 = vsel %vm356, 1, 0
        %v358 = vadd.s32 %v354, %v350
        %v359 = vadd.s32 %v355, %v357
        %v360 = vadd.s32 %v359, %v349
        %v361 = vadd.s32 %v360, %v351
        %v362 = vand.u32 %v339, 65535
        %v363 = vshrl.u32 %v339, 16
        %v364 = vand.u32 %v334, 65535
        %v365 = vshrl.u32 %v334, 16
        %v366 = vmul.u32 %v362, %v364
        %v367 = vmul.u32 %v362, %v365
        %v368 = vmul.u32 %v363, %v364
        %v369 = vmul.u32 %v363, %v365
        %v370 = vshll.u32 %v367, 16
        %v371 = vshrl.u32 %v367, 16
        %v372 = vshll.u32 %v368, 16
        %v373 = vshrl.u32 %v368, 16
        %vm374 = vc.u32 %v366, %v370
        %v375 = vsel %vm374, 1, 0
        %v376 = vadd.s32 %v366, %v370
        %v377 = vadd.s32 %v369, %v375
        %vm378 = vc.u32 %v376, %v372
        %v379 = vsel %vm378, 1, 0
        %v380 = vadd.s32 %v376, %v372
        %v381 = vadd.s32 %v377, %v379
        %v382 = vadd.s32 %v381, %v371
        %v383 = vadd.s32 %v382, %v373
        %v384 = vmul.u32 %v339, %v330
        %v385 = vadd.s32 %v361, %v380
        %vm386 = vc.u32 %v361, %v380
        %v387 = vadd.s32 %v383, 1
        %v388 = vsel %vm386, %v387, %v383
        %v389 = vadd.s32 %v384, %v388
        %v390 = vadd.s32 %v389, 536870912
        %v391 = vshrl.u32 %v390, 30
        %v392 = vshll.u32 %v391, 30
        %v393 = vsub.s32 %v389, %v392
        %vm394 = vcmp.lt.s32.totalorder %v393, 0
        %v395 = vsub.s32 0, %v393
        %v396 = vsel %vm394, %v395, %v393
        %v397 = vclz %v396
        %v398 = vsub.s32 %v397, 2
        %vm399 = vcmp.gt.s32.totalorder 0, %v398
        %v400 = vsel %vm399, 0, %v398
        %v401 = vsub.s32 32, %v400
        %v402 = vshll.u32 %v393, %v400
        %v403 = vshrl.u32 %v385, %v401
        %v404 = vor.u32 %v402, %v403
        %v405 = vsub.s32 4294967266, %v400
        %v406 = vadd.s32 %v405, 127
        %v407 = vshll.u32 %v406, 23
        %v408 = vor.u32 4788187, %v407
        %v409 = vand.u32 2147483647, %v408
        %v411 = vcvt.s32.f32 %v404
        %v412 = vmul.f32 %v411, %v409
        %v413 = vxor.u32 %v412, 2147483648
        %v414 = vsel %vm293, %v413, %v412
        %v415 = vsub.s32 4, %v391
        %v416 = vsel %vm293, %v415, %v391
        %v417 = vsel %vm292, %v134, %v414
        %v418 = vsel %vm292, 0, %v416
        %v419 = vmul.f32 %v417, %v417
        %v420 = vmul.f32 %v419, -0.001358992
        %v421 = vadd.f32 %v420, 0.041655596
        %v422 = vmul.f32 %v419, %v421
        %v423 = vadd.f32 %v422, -0.4999988
        %v424 = vmul.f32 %v419, %v423
        %v425 = vadd.f32 1.0, %v424
        %v426 = vmul.f32 %v417, %v417
        %v427 = vmul.f32 %v426, -0.00019511016
        %v428 = vadd.f32 %v427, 0.008332121
        %v429 = vmul.f32 %v426, %v428
        %v430 = vadd.f32 %v429, -0.16666654
        %v431 = vmul.f32 %v426, %v430
        %v432 = vadd.f32 %v431, 1.0
        %v433 = vmul.f32 %v432, %v417
        %vm434 = vweird.f32 %v134
        %v435 = vand.u32 %v418, 3
        %vm436 = vcmp.lt.s32.totalorder %v435, 2
        %vm437 = vcmp.eq.s32.totalorder %v435, 0
        %v438 = vxor.u32 %v433, 2147483648
        %v439 = vsel %vm437, %v425, %v438
        %vm440 = vcmp.eq.s32.totalorder %v435, 2
        %v441 = vxor.u32 %v425, 2147483648
        %v442 = vsel %vm440, %v441, %v433
        %v443 = vsel %vm436, %v439, %v442
        %v444 = vsel %vm434, nan, %v443
        %v445 = vmul.f32 %v290, 2.0
        %v446 = vmul.f32 %v445, %v444
        %v447 = vmul.f32 %v445, %v290
        %v448 = vsub.f32 1.0, %v447
        %v449 = vmul.f32 %v446, 2.0
        %v450 = vmul.f32 %v449, %v448
        %v451 = vmul.f32 %v449, %v446
        %v452 = vsub.f32 1.0, %v451
        %v453 = vmul.f32 %v450, 2.0
        %v454 = vmul.f32 %v453, %v452
        %v455 = vmul.f32 %v453, %v450
        %v456 = vsub.f32 1.0, %v455
        %457 = vst [vmem:[%s133 + $0x4] sm:$0xf] %v290
        %458 = vst [vmem:[%s133 + $0x8] sm:$0xf] %v444
        %459 = vst [vmem:[%s133 + $0xc] sm:$0xf] %v446
        %460 = vst [vmem:[%s133 + $0x10] sm:$0xf] %v448
        %461 = vst [vmem:[%s133 + $0x14] sm:$0xf] %v450
        %462 = vst [vmem:[%s133 + $0x18] sm:$0xf] %v452
        %463 = vst [vmem:[%s133 + $0x1c] sm:$0xf] %v454
        %464 = vst [vmem:[%s133 + $0x20] sm:$0xf] %v456
        %s465 = sand.u32 %s52, 1
        %s466 = scalar_lea.sflag [#allocation4], %s465
        %s467 = sand.u32 %s52, 1
        %s468 = smul.addr %s467, 40
        %s469 = scalar_lea.vmem [#allocation5], %s468
        // Predicated region
        $region29: #{tpu_custom_call.1} parent=23 // pred_check
          %p470 = pneg %p62
        $region30: #{tpu_custom_call.1} parent=23 // pred_check_branch
          %472 = sbr.rel (%p470) target = $region32
        $region31: #{tpu_custom_call.1} parent=23 // pred_region
          %474 = vsyncadd %s466, 0
          %s475 = smul.addr %s18, 8
          %s476 = scalar_lea.hbm %s1, %s475
          %s477 = sshll.u32 %s469, 4
          %s478 = int_to_ptr.vmem [resolvable:$true] %s477
          %s479 = sshll.u32 %s476, 4
          %s480 = int_to_ptr.hbm [resolvable:$true] %s479
          %485 = dma.vmem_to_hbm [thread:$0]  %s478, 640, %s480, %s466, 128, 256, 8
        $region32: #{tpu_custom_call.1} parent=23 // pred_fallthru
          _
      $region24: #{tpu_custom_call.1} parent=5 // pred_fallthru
        _
      %p486 = scmp.le.s32.totalorder 2, %s13
      // Predicated region
      $region33: #{tpu_custom_call.1} parent=5 // pred_check
        %p487 = pneg %p486
      $region34: #{tpu_custom_call.1} parent=5 // pred_check_branch
        %489 = sbr.rel (%p487) target = $region36
      $region35: #{tpu_custom_call.1} parent=5 // pred_region
        %s490 = ssub.s32 %s13, 2
        // Predicated region
        $region37: #{tpu_custom_call.1} parent=35 // pred_check
          %p491 = pneg %p68
        $region38: #{tpu_custom_call.1} parent=35 // pred_check_branch
          %493 = sbr.rel (%p491) target = $region40
        $region39: #{tpu_custom_call.1} parent=35 // pred_region
          %s494 = sand.u32 %s53, 1
          %s495 = scalar_lea.sflag [#allocation4], %s494
          %s496 = sand.u32 %s53, 1
          %s497 = smul.addr %s496, 40
          %s498 = scalar_lea.vmem [#allocation5], %s497
          %500 = dma.done %s495, 640
        $region40: #{tpu_custom_call.1} parent=35 // pred_fallthru
          _
      $region36: #{tpu_custom_call.1} parent=5 // pred_fallthru
        _
    $region6: #{tpu_custom_call.1} parent=1 // loop_footer
      %s17 = sadd.s32 1, %s13
    $region7: #{tpu_custom_call.1} parent=1 // loop_footer_branch
      %12 = sbr.rel target = $region3
    $region8: #{tpu_custom_call.1} parent=1 // loop_exit
      _
    %501 = vsyncpa [#allocation3], 1
    %s502 = scalar_lea.sflag [#allocation3], 1
    %503 = vsyncpa %s502, 1
    %504 = vsyncpa [#allocation4], 1
    %s505 = scalar_lea.sflag [#allocation4], 1
    %506 = vsyncpa %s505, 1

</llo_original>
